<compile_context>
chip_gen: v7x
topology: tpu7x:2x2x1
jax: 0.10.0
libtpu: 0.0.40
codegen_flags: <defaults>
</compile_context>

<pallas_src>
import functools

import jax
import jax.numpy as jnp
from jax import lax
from jax.experimental import pallas as pl
from jax.experimental.pallas import tpu as pltpu

EPS = 1e-5                      # nn.LayerNorm default
_INV_SQRT2 = 0.7071067811865476
_SQRT_2_OVER_PI = 0.7978845608028654


def _gelu_exact(v):
    # nn.GELU() default = exact (erf) GELU
    return 0.5 * v * (1.0 + lax.erf(v * _INV_SQRT2))


def _gelu_tanh(v):
    # Optional EUP-friendly approximation (off by default for torch parity).
    return 0.5 * v * (1.0 + jnp.tanh(_SQRT_2_OVER_PI * (v + 0.044715 * v * v * v)))


def _layernorm_f32(v, gamma, beta):
    mu = jnp.mean(v, axis=-1, keepdims=True)
    var = jnp.mean(jnp.square(v - mu), axis=-1, keepdims=True)
    return (v - mu) * lax.rsqrt(var + EPS) * gamma + beta


def mixer_block_kernel(x_ref, w1t_ref, w2t_ref, w1c_ref, w2c_ref,
                       g1_ref, b1_ref, g2_ref, b2_ref, o_ref,
                       *, compute_dtype, c_chunk, gelu_approx):
    Bt, N, D = x_ref.shape
    C = w1c_ref.shape[1]
    R = Bt * N
    gelu = _gelu_tanh if gelu_approx else _gelu_exact

    # Residual path and LayerNorm statistics stay in f32.
    x = x_ref[...].astype(jnp.float32)            # (Bt, N, D)
    xf = x.reshape(R, D)                          # free: N is a multiple of 8

    # ---- norm1 + token-mixing MLP (mixes along the patch axis N) ----
    xn = _layernorm_f32(xf, g1_ref[...], b1_ref[...]).astype(compute_dtype)
    # Lay the activation out as (N, Bt*D): the whole batch tile becomes one
    # pair of big 2-D MXU matmuls (no weight broadcast / per-batch matmuls).
    if Bt == 1:
        xn_t = xn                                                     # (N, D)
    else:
        xn3 = xn.reshape(Bt, N, D)
        xn_t = jnp.concatenate([xn3[b] for b in range(Bt)], axis=1)   # (N, Bt*D)

    h = jnp.dot(w1t_ref[...], xn_t, preferred_element_type=jnp.float32)   # (T, Bt*D)
    h = gelu(h).astype(compute_dtype)
    tok_t = jnp.dot(w2t_ref[...], h, preferred_element_type=jnp.float32)  # (N, Bt*D)

    if Bt == 1:
        tok = tok_t
    else:
        tok = jnp.concatenate([tok_t[:, b * D:(b + 1) * D] for b in range(Bt)],
                              axis=0)                                  # (R, D)

    x1 = xf + tok                                  # residual, f32

    # ---- norm2 + channel-mixing MLP (mixes along the feature axis D) ----
    x2n = _layernorm_f32(x1, g2_ref[...], b2_ref[...]).astype(compute_dtype)

    if c_chunk >= C:
        h2 = jnp.dot(x2n, w1c_ref[...], preferred_element_type=jnp.float32)   # (R, C)
        h2 = gelu(h2).astype(compute_dtype)
        ch = jnp.dot(h2, w2c_ref[...], preferred_element_type=jnp.float32)    # (R, D)
    else:
        n_chunks = C // c_chunk

        def body(ci, acc):
            c0 = pl.multiple_of(ci * c_chunk, c_chunk)
            h2 = jnp.dot(x2n, w1c_ref[:, pl.ds(c0, c_chunk)],
                         preferred_element_type=jnp.float32)           # (R, Cc)
            h2 = gelu(h2).astype(compute_dtype)
            return acc + jnp.dot(h2, w2c_ref[pl.ds(c0, c_chunk), :],
                                 preferred_element_type=jnp.float32)   # (R, D)

        ch = lax.fori_loop(0, n_chunks, body, jnp.zeros((R, D), jnp.float32),
                           unroll=(n_chunks <= 8))

    out = x1 + ch                                  # residual, f32
    o_ref[...] = out.reshape(Bt, N, D).astype(o_ref.dtype)


@functools.lru_cache(maxsize=1)
def _vmem_capacity_bytes():
    try:
        return int(pltpu.get_tpu_info().vmem_capacity_bytes)
    except Exception:
        return 64 * 1024 * 1024        # conservative fallback (v7x-sized)


def _auto_c_chunk(C, target=1024):
    if C <= target:
        return C
    for cc in range(target - target % 128, 127, -128):
        if C % cc == 0:
            return cc
    return C                           # no friendly divisor -> single shot


def _estimate_step_bytes(bb, N, D, T, C, c_chunk, x_bytes, out_bytes, cdt):
    R = bb * N
    cc = min(C, c_chunk)
    return (2 * R * D * x_bytes                # double-buffered input tile
            + 2 * R * D * out_bytes            # double-buffered output tile
            + 8 * R * D * 4                    # f32 row intermediates (+slack)
            + 3 * R * D * cdt                  # compute-dtype copies
            + bb * T * D * (4 + cdt)           # token hidden (f32 + cast)
            + R * cc * (4 + cdt))              # channel hidden chunk (f32 + cast)


def _auto_block_b(B, N, D, T, C, c_chunk, x_bytes, out_bytes, cdt, budget):
    fixed = (2 * T * N + 2 * D * C) * cdt + 4 * D * 4   # resident weights/params
    hi = max(1, B // 2)    # keep grid >= 2 so the batch axis splits over v7x's 2 TCs
    best = 1
    for bb in range(1, hi + 1):
        if B % bb == 0 and fixed + _estimate_step_bytes(
                bb, N, D, T, C, c_chunk, x_bytes, out_bytes, cdt) <= budget:
            best = bb
    return best


@functools.partial(jax.jit, static_argnames=("block_b", "compute_dtype",
                                              "c_chunk", "gelu_approx"))
def mixer_block(x, w1_tok, w2_tok, w1_ch, w2_ch, g1, b1, g2, b2, *,
                block_b=None, compute_dtype=jnp.bfloat16, c_chunk=None,
                gelu_approx=False):
    """x: (B, N, D). Weights follow torch nn.Linear (out, in) convention."""
    B, N, D = x.shape
    T = w1_tok.shape[0]   # token_dim
    C = w1_ch.shape[0]    # channel_dim

    # Pad num_patches to a sublane multiple; zero-padded token-weight
    # columns/rows keep padded rows out of the real outputs.
    N_pad = ((N + 7) // 8) * 8
    pn = N_pad - N
    x_in = jnp.pad(x, ((0, 0), (0, pn), (0, 0))) if pn else x
    w1t = (jnp.pad(w1_tok, ((0, 0), (0, pn))) if pn else w1_tok).astype(compute_dtype)
    w2t = (jnp.pad(w2_tok, ((0, pn), (0, 0))) if pn else w2_tok).astype(compute_dtype)
    # TODO(synk): for D % 128 != 0 also pad D to a lane multiple (needs a masked
    # LayerNorm) to guarantee unmasked, lane-dense vector stores.
    w1c_t = w1_ch.T.astype(compute_dtype)          # (D, C)
    w2c_t = w2_ch.T.astype(compute_dtype)          # (C, D)
    g1_ = g1.reshape(1, D).astype(jnp.float32)
    b1_ = b1.reshape(1, D).astype(jnp.float32)
    g2_ = g2.reshape(1, D).astype(jnp.float32)
    b2_ = b2.reshape(1, D).astype(jnp.float32)

    cdt = jnp.dtype(compute_dtype).itemsize
    x_bytes = x.dtype.itemsize
    out_bytes = x.dtype.itemsize

    if c_chunk is None:
        c_chunk = _auto_c_chunk(C)
    c_chunk = min(int(c_chunk), C)
    if C % c_chunk != 0:
        c_chunk = C                                # fall back to single-shot

    # Generation-aware VMEM budget (128 MiB v5e/v6e, 64 MiB v7x).
    cap = _vmem_capacity_bytes()
    vmem_limit = int(cap * 0.85)                   # headroom for Mosaic scratch
    tile_budget = int(vmem_limit * 0.85)
    if block_b is None or B % block_b != 0:
        block_b = _auto_block_b(B, N_pad, D, T, C, c_chunk,
                                x_bytes, out_bytes, cdt, tile_budget)
    grid = (B // block_b,)

    cost = pl.CostEstimate(
        flops=int(B * (4 * N_pad * T * D + 4 * N_pad * D * C)),
        transcendentals=int(B * (T * D + N_pad * C)),
        bytes_accessed=int(2 * B * N_pad * D * x_bytes
                           + (2 * T * N_pad + 2 * D * C) * cdt + 4 * D * 4),
    )

    # Constant operands: whole-array resident in VMEM (single-buffered).
    def resident():
        return pl.BlockSpec(memory_space=pltpu.MemorySpace.VMEM)

    kernel = functools.partial(mixer_block_kernel, compute_dtype=compute_dtype,
                               c_chunk=c_chunk, gelu_approx=gelu_approx)

    out = pl.pallas_call(
        kernel,
        out_shape=jax.ShapeDtypeStruct((B, N_pad, D), x.dtype),
        grid=grid,
        in_specs=[
            pl.BlockSpec((block_b, N_pad, D), lambda b: (b, 0, 0)),  # x tile
            resident(),   # token fc1 weight (T, N_pad)
            resident(),   # token fc2 weight (N_pad, T)
            resident(),   # channel fc1 weight, pre-transposed (D, C)
            resident(),   # channel fc2 weight, pre-transposed (C, D)
            resident(),   # norm1 gamma (1, D)
            resident(),   # norm1 beta  (1, D)
            resident(),   # norm2 gamma (1, D)
            resident(),   # norm2 beta  (1, D)
        ],
        out_specs=pl.BlockSpec((block_b, N_pad, D), lambda b: (b, 0, 0)),
        compiler_params=pltpu.CompilerParams(
            dimension_semantics=("parallel",),
            vmem_limit_bytes=vmem_limit,
        ),
        cost_estimate=cost,
    )(x_in, w1t, w2t, w1c_t, w2c_t, g1_, b1_, g2_, b2_)

    return out[:, :N, :] if pn else out


def mixer_block_ref(x, w1_tok, w2_tok, w1_ch, w2_ch, g1, b1, g2, b2):
    """Pure-JAX reference with the exact PyTorch forward semantics."""
    def ln(v, g, b):
        mu = jnp.mean(v, axis=-1, keepdims=True)
        var = jnp.mean(jnp.square(v - mu), axis=-1, keepdims=True)
        return (v - mu) / jnp.sqrt(var + EPS) * g + b

    y = jnp.swapaxes(ln(x, g1, b1), 1, 2)                      # (B, D, N)
    t = _gelu_exact(jnp.einsum('bdn,tn->bdt', y, w1_tok))      # fc1 (no bias)
    t = jnp.einsum('bdt,nt->bdn', t, w2_tok)                   # fc2 (no bias)
    x = x + jnp.swapaxes(t, 1, 2)                              # (B, N, D)
    z = ln(x, g2, b2)
    c = _gelu_exact(jnp.einsum('bnd,cd->bnc', z, w1_ch))
    c = jnp.einsum('bnc,dc->bnd', c, w2_ch)
    return x + c


def _make_inputs(key, B, N, D, T, C):
    kx, k1, k2, k3, k4, k5, k6 = jax.random.split(key, 7)
    x = jax.random.normal(kx, (B, N, D), dtype=jnp.float32)
    # torch nn.Linear weights have shape (out_features, in_features), no bias
    w1_tok = 0.05 * jax.random.normal(k1, (T, N), dtype=jnp.float32)
    w2_tok = 0.05 * jax.random.normal(k2, (N, T), dtype=jnp.float32)
    w1_ch = 0.05 * jax.random.normal(k3, (C, D), dtype=jnp.float32)
    w2_ch = 0.05 * jax.random.normal(k4, (D, C), dtype=jnp.float32)
    g1 = 1.0 + 0.1 * jax.random.normal(k5, (D,), dtype=jnp.float32)
    b1 = 0.1 * jax.random.normal(k6, (D,), dtype=jnp.float32)
    g2 = jnp.ones((D,), dtype=jnp.float32)
    b2 = jnp.zeros((D,), dtype=jnp.float32)
    return x, w1_tok, w2_tok, w1_ch, w2_ch, g1, b1, g2, b2


if __name__ == "__main__":
    key = jax.random.PRNGKey(0)
    ka, kb = jax.random.split(key)

    # ---- config A: lane/sublane-friendly shapes (D mult of 128, N mult of 8)
    B, N, D, T, C = 2, 16, 128, 32, 256
    args = _make_inputs(ka, B, N, D, T, C)
    ref = mixer_block_ref(*args)

    # 1) f32 matmuls, batch tile of 2 (exercises the (N, Bt*D) token layout).
    out = jax.block_until_ready(
        mixer_block(*args, block_b=2, compute_dtype=jnp.float32))
    assert out.shape == (B, N, D)
    assert jnp.max(jnp.abs(out - ref)) < 1e-3, "f32 path mismatch vs reference"

    # 2) Default fast path: bf16 MXU operands, auto tiling (grid >= 2).
    out = jax.block_until_ready(mixer_block(*args))
    assert out.shape == (B, N, D)
    assert jnp.max(jnp.abs(out - ref)) < 7.5e-2, "bf16 path mismatch vs reference"

    # 3) bf16, batch tile of 2, channel MLP streamed over C in 128-wide chunks.
    out = jax.block_until_ready(mixer_block(*args, block_b=2, c_chunk=128))
    assert jnp.max(jnp.abs(out - ref)) < 7.5e-2, "chunked channel-MLP mismatch"

    # ---- config B: N not a multiple of 8 -> exercises the padding path ----
    B2, N2, D2, T2, C2 = 2, 12, 64, 8, 48
    args2 = _make_inputs(kb, B2, N2, D2, T2, C2)
    ref2 = mixer_block_ref(*args2)
    out2 = jax.block_until_ready(
        mixer_block(*args2, compute_dtype=jnp.float32))
    assert out2.shape == (B2, N2, D2)
    assert jnp.max(jnp.abs(out2 - ref2)) < 1e-3, "padded-N path mismatch"

    print("KERNEL_OK")
</pallas_src>

<mosaic_0001>
module attributes {stable_mosaic.version = 11 : i64} {
  func.func @mixer_block_kernel(%arg0: i32, %arg1: memref<2x16x128xf32, #tpu.memory_space<vmem>>, %arg2: memref<32x16xf32, #tpu.memory_space<vmem>>, %arg3: memref<16x32xf32, #tpu.memory_space<vmem>>, %arg4: memref<128x256xf32, #tpu.memory_space<vmem>>, %arg5: memref<256x128xf32, #tpu.memory_space<vmem>>, %arg6: memref<1x128xf32, #tpu.memory_space<vmem>>, %arg7: memref<1x128xf32, #tpu.memory_space<vmem>>, %arg8: memref<1x128xf32, #tpu.memory_space<vmem>>, %arg9: memref<1x128xf32, #tpu.memory_space<vmem>>, %arg10: memref<2x16x128xf32, #tpu.memory_space<vmem>>) attributes {dimension_semantics = [#tpu.dimension_semantics<parallel>], iteration_bounds = array<i64: 1>, scalar_prefetch = 0 : i64, scratch_operands = 0 : i64, tpu.core_type = #tpu.core_type<tc>, window_params = [{transform_indices = @transform_0, window_bounds = array<i64: 2, 16, 128>}, {pipeline_mode = #tpu.pipeline_mode<synchronous>, transform_indices = @transform_1, window_bounds = array<i64: 32, 16>}, {pipeline_mode = #tpu.pipeline_mode<synchronous>, transform_indices = @transform_2, window_bounds = array<i64: 16, 32>}, {pipeline_mode = #tpu.pipeline_mode<synchronous>, transform_indices = @transform_3, window_bounds = array<i64: 128, 256>}, {pipeline_mode = #tpu.pipeline_mode<synchronous>, transform_indices = @transform_4, window_bounds = array<i64: 256, 128>}, {pipeline_mode = #tpu.pipeline_mode<synchronous>, transform_indices = @transform_5, window_bounds = array<i64: 1, 128>}, {pipeline_mode = #tpu.pipeline_mode<synchronous>, transform_indices = @transform_6, window_bounds = array<i64: 1, 128>}, {pipeline_mode = #tpu.pipeline_mode<synchronous>, transform_indices = @transform_7, window_bounds = array<i64: 1, 128>}, {pipeline_mode = #tpu.pipeline_mode<synchronous>, transform_indices = @transform_8, window_bounds = array<i64: 1, 128>}, {transform_indices = @transform_9, window_bounds = array<i64: 2, 16, 128>}]} {
    %c0 = arith.constant 0 : index
    %c0_0 = arith.constant 0 : index
    %c0_1 = arith.constant 0 : index
    %0 = vector.load %arg1[%c0, %c0_0, %c0_1] : memref<2x16x128xf32, #tpu.memory_space<vmem>>, vector<2x16x128xf32>
    %1 = vector.shape_cast %0 : vector<2x16x128xf32> to vector<32x128xf32>
    %c0_2 = arith.constant 0 : index
    %c0_3 = arith.constant 0 : index
    %2 = vector.load %arg6[%c0_2, %c0_3] : memref<1x128xf32, #tpu.memory_space<vmem>>, vector<1x128xf32>
    %c0_4 = arith.constant 0 : index
    %c0_5 = arith.constant 0 : index
    %3 = vector.load %arg7[%c0_4, %c0_5] : memref<1x128xf32, #tpu.memory_space<vmem>>, vector<1x128xf32>
    %cst = arith.constant dense<0.000000e+00> : vector<32xf32>
    %4 = vector.multi_reduction <add>, %1, %cst [1] : vector<32x128xf32> to vector<32xf32>
    %5 = vector.shape_cast %4 : vector<32xf32> to vector<32x1xf32>
    %cst_6 = arith.constant 1.280000e+02 : f32
    %6 = vector.broadcast %cst_6 : f32 to vector<32x1xf32>
    %7 = arith.divf %5, %6 : vector<32x1xf32>
    %8 = vector.broadcast %7 : vector<32x1xf32> to vector<32x128xf32>
    %9 = arith.subf %1, %8 : vector<32x128xf32>
    %10 = arith.mulf %9, %9 : vector<32x128xf32>
    %cst_7 = arith.constant dense<0.000000e+00> : vector<32xf32>
    %11 = vector.multi_reduction <add>, %10, %cst_7 [1] : vector<32x128xf32> to vector<32xf32>
    %12 = vector.shape_cast %11 : vector<32xf32> to vector<32x1xf32>
    %cst_8 = arith.constant 1.280000e+02 : f32
    %13 = vector.broadcast %cst_8 : f32 to vector<32x1xf32>
    %14 = arith.divf %12, %13 : vector<32x1xf32>
    %15 = vector.broadcast %7 : vector<32x1xf32> to vector<32x128xf32>
    %16 = arith.subf %1, %15 : vector<32x128xf32>
    %cst_9 = arith.constant 9.99999974E-6 : f32
    %17 = vector.broadcast %cst_9 : f32 to vector<32x1xf32>
    %18 = arith.addf %14, %17 : vector<32x1xf32>
    %19 = math.rsqrt %18 : vector<32x1xf32>
    %20 = vector.broadcast %19 : vector<32x1xf32> to vector<32x128xf32>
    %21 = arith.mulf %16, %20 : vector<32x128xf32>
    %22 = vector.broadcast %2 : vector<1x128xf32> to vector<32x128xf32>
    %23 = arith.mulf %21, %22 : vector<32x128xf32>
    %24 = vector.broadcast %3 : vector<1x128xf32> to vector<32x128xf32>
    %25 = arith.addf %23, %24 : vector<32x128xf32>
    %26 = vector.shape_cast %25 : vector<32x128xf32> to vector<2x16x128xf32>
    %27 = vector.extract_strided_slice %26 {offsets = [0, 0, 0], sizes = [1, 16, 128], strides = [1, 1, 1]} : vector<2x16x128xf32> to vector<1x16x128xf32>
    %28 = vector.shape_cast %27 : vector<1x16x128xf32> to vector<16x128xf32>
    %29 = vector.extract_strided_slice %26 {offsets = [1, 0, 0], sizes = [1, 16, 128], strides = [1, 1, 1]} : vector<2x16x128xf32> to vector<1x16x128xf32>
    %30 = vector.shape_cast %29 : vector<1x16x128xf32> to vector<16x128xf32>
    %31 = tpu.concatenate %28, %30 in 1 : vector<16x128xf32>, vector<16x128xf32> -> vector<16x256xf32>
    %c0_10 = arith.constant 0 : index
    %c0_11 = arith.constant 0 : index
    %32 = vector.load %arg2[%c0_10, %c0_11] : memref<32x16xf32, #tpu.memory_space<vmem>>, vector<32x16xf32>
    %cst_12 = arith.constant dense<0.000000e+00> : vector<32x256xf32>
    %33 = tpu.matmul %32, %31, %cst_12 {dimension_numbers = #tpu.dot_dimension_numbers<[1], [0], [0], [1], [0, 0, 1, 1], [], []>} : vector<32x16xf32>, vector<16x256xf32>, vector<32x256xf32> -> vector<32x256xf32>
    %cst_13 = arith.constant 5.000000e-01 : f32
    %34 = vector.broadcast %cst_13 : f32 to vector<32x256xf32>
    %35 = arith.mulf %34, %33 : vector<32x256xf32>
    %cst_14 = arith.constant 0.707106769 : f32
    %36 = vector.broadcast %cst_14 : f32 to vector<32x256xf32>
    %37 = arith.mulf %33, %36 : vector<32x256xf32>
    %38 = math.erf %37 : vector<32x256xf32>
    %cst_15 = arith.constant 1.000000e+00 : f32
    %39 = vector.broadcast %cst_15 : f32 to vector<32x256xf32>
    %40 = arith.addf %39, %38 : vector<32x256xf32>
    %41 = arith.mulf %35, %40 : vector<32x256xf32>
    %c0_16 = arith.constant 0 : index
    %c0_17 = arith.constant 0 : index
    %42 = vector.load %arg3[%c0_16, %c0_17] : memref<16x32xf32, #tpu.memory_space<vmem>>, vector<16x32xf32>
    %cst_18 = arith.constant dense<0.000000e+00> : vector<16x256xf32>
    %43 = tpu.matmul %42, %41, %cst_18 {dimension_numbers = #tpu.dot_dimension_numbers<[1], [0], [0], [1], [0, 0, 1, 1], [], []>} : vector<16x32xf32>, vector<32x256xf32>, vector<16x256xf32> -> vector<16x256xf32>
    %44 = vector.extract_strided_slice %43 {offsets = [0, 0], sizes = [16, 128], strides = [1, 1]} : vector<16x256xf32> to vector<16x128xf32>
    %45 = vector.extract_strided_slice %43 {offsets = [0, 128], sizes = [16, 128], strides = [1, 1]} : vector<16x256xf32> to vector<16x128xf32>
    %46 = tpu.concatenate %44, %45 in 0 : vector<16x128xf32>, vector<16x128xf32> -> vector<32x128xf32>
    %47 = arith.addf %1, %46 : vector<32x128xf32>
    %c0_19 = arith.constant 0 : index
    %c0_20 = arith.constant 0 : index
    %48 = vector.load %arg8[%c0_19, %c0_20] : memref<1x128xf32, #tpu.memory_space<vmem>>, vector<1x128xf32>
    %c0_21 = arith.constant 0 : index
    %c0_22 = arith.constant 0 : index
    %49 = vector.load %arg9[%c0_21, %c0_22] : memref<1x128xf32, #tpu.memory_space<vmem>>, vector<1x128xf32>
    %cst_23 = arith.constant dense<0.000000e+00> : vector<32xf32>
    %50 = vector.multi_reduction <add>, %47, %cst_23 [1] : vector<32x128xf32> to vector<32xf32>
    %51 = vector.shape_cast %50 : vector<32xf32> to vector<32x1xf32>
    %cst_24 = arith.constant 1.280000e+02 : f32
    %52 = vector.broadcast %cst_24 : f32 to vector<32x1xf32>
    %53 = arith.divf %51, %52 : vector<32x1xf32>
    %54 = vector.broadcast %53 : vector<32x1xf32> to vector<32x128xf32>
    %55 = arith.subf %47, %54 : vector<32x128xf32>
    %56 = arith.mulf %55, %55 : vector<32x128xf32>
    %cst_25 = arith.constant dense<0.000000e+00> : vector<32xf32>
    %57 = vector.multi_reduction <add>, %56, %cst_25 [1] : vector<32x128xf32> to vector<32xf32>
    %58 = vector.shape_cast %57 : vector<32xf32> to vector<32x1xf32>
    %cst_26 = arith.constant 1.280000e+02 : f32
    %59 = vector.broadcast %cst_26 : f32 to vector<32x1xf32>
    %60 = arith.divf %58, %59 : vector<32x1xf32>
    %61 = vector.broadcast %53 : vector<32x1xf32> to vector<32x128xf32>
    %62 = arith.subf %47, %61 : vector<32x128xf32>
    %cst_27 = arith.constant 9.99999974E-6 : f32
    %63 = vector.broadcast %cst_27 : f32 to vector<32x1xf32>
    %64 = arith.addf %60, %63 : vector<32x1xf32>
    %65 = math.rsqrt %64 : vector<32x1xf32>
    %66 = vector.broadcast %65 : vector<32x1xf32> to vector<32x128xf32>
    %67 = arith.mulf %62, %66 : vector<32x128xf32>
    %68 = vector.broadcast %48 : vector<1x128xf32> to vector<32x128xf32>
    %69 = arith.mulf %67, %68 : vector<32x128xf32>
    %70 = vector.broadcast %49 : vector<1x128xf32> to vector<32x128xf32>
    %71 = arith.addf %69, %70 : vector<32x128xf32>
    %c0_28 = arith.constant 0 : index
    %c0_29 = arith.constant 0 : index
    %72 = vector.load %arg4[%c0_28, %c0_29] : memref<128x256xf32, #tpu.memory_space<vmem>>, vector<128x256xf32>
    %cst_30 = arith.constant dense<0.000000e+00> : vector<32x256xf32>
    %73 = tpu.matmul %71, %72, %cst_30 {dimension_numbers = #tpu.dot_dimension_numbers<[1], [0], [0], [1], [0, 0, 1, 1], [], []>} : vector<32x128xf32>, vector<128x256xf32>, vector<32x256xf32> -> vector<32x256xf32>
    %cst_31 = arith.constant 5.000000e-01 : f32
    %74 = vector.broadcast %cst_31 : f32 to vector<32x256xf32>
    %75 = arith.mulf %74, %73 : vector<32x256xf32>
    %cst_32 = arith.constant 0.707106769 : f32
    %76 = vector.broadcast %cst_32 : f32 to vector<32x256xf32>
    %77 = arith.mulf %73, %76 : vector<32x256xf32>
    %78 = math.erf %77 : vector<32x256xf32>
    %cst_33 = arith.constant 1.000000e+00 : f32
    %79 = vector.broadcast %cst_33 : f32 to vector<32x256xf32>
    %80 = arith.addf %79, %78 : vector<32x256xf32>
    %81 = arith.mulf %75, %80 : vector<32x256xf32>
    %c0_34 = arith.constant 0 : index
    %c0_35 = arith.constant 0 : index
    %82 = vector.load %arg5[%c0_34, %c0_35] : memref<256x128xf32, #tpu.memory_space<vmem>>, vector<256x128xf32>
    %cst_36 = arith.constant dense<0.000000e+00> : vector<32x128xf32>
    %83 = tpu.matmul %81, %82, %cst_36 {dimension_numbers = #tpu.dot_dimension_numbers<[1], [0], [0], [1], [0, 0, 1, 1], [], []>} : vector<32x256xf32>, vector<256x128xf32>, vector<32x128xf32> -> vector<32x128xf32>
    %84 = arith.addf %47, %83 : vector<32x128xf32>
    %85 = vector.shape_cast %84 : vector<32x128xf32> to vector<2x16x128xf32>
    %c0_37 = arith.constant 0 : index
    %c0_38 = arith.constant 0 : index
    %c0_39 = arith.constant 0 : index
    %86 = vector.load %arg10[%c0_37, %c0_38, %c0_39] : memref<2x16x128xf32, #tpu.memory_space<vmem>>, vector<2x16x128xf32>
    tpu.vector_store %arg10[%c0_37, %c0_38, %c0_39], %85 {strides = array<i32>} : memref<2x16x128xf32, #tpu.memory_space<vmem>>, vector<2x16x128xf32>,
    return
  }
  func.func @transform_0(%arg0: i32) -> (i32, i32, i32) {
    %c0_i32 = arith.constant 0 : i32
    %c0_i32_0 = arith.constant 0 : i32
    %c0_i32_1 = arith.constant 0 : i32
    return %arg0, %c0_i32, %c0_i32_0 : i32, i32, i32
  }
  func.func @transform_1(%arg0: i32) -> (i32, i32) {
    %c0_i32 = arith.constant 0 : i32
    %c0_i32_0 = arith.constant 0 : i32
    %c0_i32_1 = arith.constant 0 : i32
    return %c0_i32, %c0_i32_0 : i32, i32
  }
  func.func @transform_2(%arg0: i32) -> (i32, i32) {
    %c0_i32 = arith.constant 0 : i32
    %c0_i32_0 = arith.constant 0 : i32
    %c0_i32_1 = arith.constant 0 : i32
    return %c0_i32, %c0_i32_0 : i32, i32
  }
  func.func @transform_3(%arg0: i32) -> (i32, i32) {
    %c0_i32 = arith.constant 0 : i32
    %c0_i32_0 = arith.constant 0 : i32
    %c0_i32_1 = arith.constant 0 : i32
    return %c0_i32, %c0_i32_0 : i32, i32
  }
  func.func @transform_4(%arg0: i32) -> (i32, i32) {
    %c0_i32 = arith.constant 0 : i32
    %c0_i32_0 = arith.constant 0 : i32
    %c0_i32_1 = arith.constant 0 : i32
    return %c0_i32, %c0_i32_0 : i32, i32
  }
  func.func @transform_5(%arg0: i32) -> (i32, i32) {
    %c0_i32 = arith.constant 0 : i32
    %c0_i32_0 = arith.constant 0 : i32
    %c0_i32_1 = arith.constant 0 : i32
    return %c0_i32, %c0_i32_0 : i32, i32
  }
  func.func @transform_6(%arg0: i32) -> (i32, i32) {
    %c0_i32 = arith.constant 0 : i32
    %c0_i32_0 = arith.constant 0 : i32
    %c0_i32_1 = arith.constant 0 : i32
    return %c0_i32, %c0_i32_0 : i32, i32
  }
  func.func @transform_7(%arg0: i32) -> (i32, i32) {
    %c0_i32 = arith.constant 0 : i32
    %c0_i32_0 = arith.constant 0 : i32
    %c0_i32_1 = arith.constant 0 : i32
    return %c0_i32, %c0_i32_0 : i32, i32
  }
  func.func @transform_8(%arg0: i32) -> (i32, i32) {
    %c0_i32 = arith.constant 0 : i32
    %c0_i32_0 = arith.constant 0 : i32
    %c0_i32_1 = arith.constant 0 : i32
    return %c0_i32, %c0_i32_0 : i32, i32
  }
  func.func @transform_9(%arg0: i32) -> (i32, i32, i32) {
    %c0_i32 = arith.constant 0 : i32
    %c0_i32_0 = arith.constant 0 : i32
    %c0_i32_1 = arith.constant 0 : i32
    return %arg0, %c0_i32, %c0_i32_0 : i32, i32, i32
  }
}

</mosaic_0001>

<llo_original>
// kernel: mixer_block.1
$region0: #{mixer_block.1}
  #allocation0 [shape = 'u32[]', space=smem, size = 0x4, offset = 0x4, fixed_abs, tag = 'smem constant byte address 0x4 - core index']
  #allocation1 [shape = 'u32[144,128]{1,0:T(1,128)}', space=vmem, size = 0x12000, scoped, tag = 'internal scratch']
  %s0 = inlined_call_operand.vmem [shape: f32[2,16,128], index: 0, kind: input, shape index: {}]
  %s1 = inlined_call_operand.vmem [shape: f32[32,16], index: 1, kind: input, shape index: {}]
  %s2 = inlined_call_operand.vmem [shape: f32[16,32], index: 2, kind: input, shape index: {}]
  %s3 = inlined_call_operand.vmem [shape: f32[128,256], index: 3, kind: input, shape index: {}]
  %s4 = inlined_call_operand.vmem [shape: f32[256,128], index: 4, kind: input, shape index: {}]
  %s5 = inlined_call_operand.vmem [shape: f32[1,128], index: 5, kind: input, shape index: {}]
  %s6 = inlined_call_operand.vmem [shape: f32[1,128], index: 6, kind: input, shape index: {}]
  %s7 = inlined_call_operand.vmem [shape: f32[1,128], index: 7, kind: input, shape index: {}]
  %s8 = inlined_call_operand.vmem [shape: f32[1,128], index: 8, kind: input, shape index: {}]
  %s9 = inlined_call_operand.hbm [shape: f32[2,16,128], index: 9, kind: output, shape index: {}]
  %s10 = sld [smem:[#allocation0]]
  $region46: #{mixer_block.1} parent=0
    _
  %s12 = ssub.s32 1, %s10
  %s13 = scalar_select 0, %s12, %s10
  $region1: #{mixer_block.1} parent=0
    #allocation2 [shape = 'u8[16384]{0}', space=vmem, size = 0x4000, scoped, tag = 'output window, operand 0, single buffered']
    #allocation3 [shape = 's32[1]{0}', space=sflag, size = 0x4, scoped, tag = 'scoped memory for mixer_block.1']
    %14 = vsyncpa [#allocation3], 0
    // Predicated region
    $region2: #{mixer_block.1} parent=1 // pred_check
      _
    $region3: #{mixer_block.1} parent=1 // pred_check_branch
      %16 = sbr.rel (0) target = $region5
    $region4: #{mixer_block.1} parent=1 // pred_region
      _
    $region5: #{mixer_block.1} parent=1 // pred_fallthru
      _
    // Predicated region
    $region6: #{mixer_block.1} parent=1 // pred_check
      _
    $region7: #{mixer_block.1} parent=1 // pred_check_branch
      %18 = sbr.rel (0) target = $region9
    $region8: #{mixer_block.1} parent=1 // pred_region
      _
    $region9: #{mixer_block.1} parent=1 // pred_fallthru
      _
    // Predicated region
    $region10: #{mixer_block.1} parent=1 // pred_check
      _
    $region11: #{mixer_block.1} parent=1 // pred_check_branch
      %20 = sbr.rel (0) target = $region13
    $region12: #{mixer_block.1} parent=1 // pred_region
      _
    $region13: #{mixer_block.1} parent=1 // pred_fallthru
      _
    // Predicated region
    $region14: #{mixer_block.1} parent=1 // pred_check
      _
    $region15: #{mixer_block.1} parent=1 // pred_check_branch
      %22 = sbr.rel (0) target = $region17
    $region16: #{mixer_block.1} parent=1 // pred_region
      _
    $region17: #{mixer_block.1} parent=1 // pred_fallthru
      _
    // Predicated region
    $region18: #{mixer_block.1} parent=1 // pred_check
      _
    $region19: #{mixer_block.1} parent=1 // pred_check_branch
      %24 = sbr.rel (0) target = $region21
    $region20: #{mixer_block.1} parent=1 // pred_region
      _
    $region21: #{mixer_block.1} parent=1 // pred_fallthru
      _
    // Predicated region
    $region22: #{mixer_block.1} parent=1 // pred_check
      _
    $region23: #{mixer_block.1} parent=1 // pred_check_branch
      %26 = sbr.rel (0) target = $region25
    $region24: #{mixer_block.1} parent=1 // pred_region
      _
    $region25: #{mixer_block.1} parent=1 // pred_fallthru
      _
    // Predicated region
    $region26: #{mixer_block.1} parent=1 // pred_check
      _
    $region27: #{mixer_block.1} parent=1 // pred_check_branch
      %28 = sbr.rel (0) target = $region29
    $region28: #{mixer_block.1} parent=1 // pred_region
      _
    $region29: #{mixer_block.1} parent=1 // pred_fallthru
      _
    // Predicated region
    $region30: #{mixer_block.1} parent=1 // pred_check
      _
    $region31: #{mixer_block.1} parent=1 // pred_check_branch
      %30 = sbr.rel (0) target = $region33
    $region32: #{mixer_block.1} parent=1 // pred_region
      _
    $region33: #{mixer_block.1} parent=1 // pred_fallthru
      _
    // Predicated region
    $region34: #{mixer_block.1} parent=1 // pred_check
      _
    $region35: #{mixer_block.1} parent=1 // pred_check_branch
      %32 = sbr.rel (0) target = $region37
    $region36: #{mixer_block.1} parent=1 // pred_region
      _
    $region37: #{mixer_block.1} parent=1 // pred_fallthru
      _
    %v33 = vld [vmem:[%s0] sm:$0xff]
    %v34 = vld [vmem:[%s0 + $0x8] sm:$0xff]
    %v35 = vld [vmem:[%s0 + $0x10] sm:$0xff]
    %v36 = vld [vmem:[%s0 + $0x18] sm:$0xff]
    %v37 = vld [vmem:[%s5] sm:$0x1]
    %v38 = vld [vmem:[%s6] sm:$0x1]
    %39 = vadd.xlane.f32.xlu0 %v33
    %v40 = vpop.xlane.xlu0 %39
    %41 = vadd.xlane.f32.xlu0 %v34
    %v42 = vpop.xlane.xlu0 %41
    %43 = vadd.xlane.f32.xlu0 %v35
    %v44 = vpop.xlane.xlu0 %43
    %45 = vadd.xlane.f32.xlu0 %v36
    %v46 = vpop.xlane.xlu0 %45
    %v47 = vrcp.pop 128.0
    %v48 = vmul.f32 %v40, %v47
    %v49 = vmul.f32 %v42, %v47
    %v50 = vmul.f32 %v44, %v47
    %v51 = vmul.f32 %v46, %v47
    %v52 = vsub.f32 %v33, %v48
    %v53 = vsub.f32 %v34, %v49
    %v54 = vsub.f32 %v35, %v50
    %v55 = vsub.f32 %v36, %v51
    %v56 = vmul.f32 %v52, %v52
    %v57 = vmul.f32 %v53, %v53
    %v58 = vmul.f32 %v54, %v54
    %v59 = vmul.f32 %v55, %v55
    %60 = vadd.xlane.f32.xlu0 %v56
    %v61 = vpop.xlane.xlu0 %60
    %62 = vadd.xlane.f32.xlu0 %v57
    %v63 = vpop.xlane.xlu0 %62
    %64 = vadd.xlane.f32.xlu0 %v58
    %v65 = vpop.xlane.xlu0 %64
    %66 = vadd.xlane.f32.xlu0 %v59
    %v67 = vpop.xlane.xlu0 %66
    %v68 = vmul.f32 %v61, %v47
    %v69 = vmul.f32 %v63, %v47
    %v70 = vmul.f32 %v65, %v47
    %v71 = vmul.f32 %v67, %v47
    %v72 = vadd.f32 %v68, 1e-05
    %v73 = vadd.f32 %v69, 1e-05
    %v74 = vadd.f32 %v70, 1e-05
    %v75 = vadd.f32 %v71, 1e-05
    %v76 = vrsqrt.pop %v72
    %v77 = vrsqrt.pop %v73
    %v78 = vrsqrt.pop %v74
    %v79 = vrsqrt.pop %v75
    %v80 = vmul.f32 %v52, %v76
    %v81 = vmul.f32 %v53, %v77
    %v82 = vmul.f32 %v54, %v78
    %v83 = vmul.f32 %v55, %v79
    %v85 = vlaneseq
    %v86 = vshrl.u32 %v85, 7
    %v87 = vsub.s32 0, %v86
    %v88 = vrot.slane %v37, %v87
    %v90 = vmul.f32 %v80, %v88
    %v91 = vmul.f32 %v81, %v88
    %v92 = vmul.f32 %v82, %v88
    %v93 = vmul.f32 %v83, %v88
    %v95 = vlaneseq
    %v96 = vshrl.u32 %v95, 7
    %v97 = vsub.s32 0, %v96
    %v98 = vrot.slane %v38, %v97
    %v100 = vadd.f32 %v90, %v98
    %v101 = vadd.f32 %v91, %v98
    %v102 = vadd.f32 %v92, %v98
    %v103 = vadd.f32 %v93, %v98
    %v104 = vld [vmem:[%s1] sm:$0xff]
    %v105 = vld [vmem:[%s1 + $0x8] sm:$0xff]
    %v106 = vld [vmem:[%s1 + $0x10] sm:$0xff]
    %v107 = vld [vmem:[%s1 + $0x18] sm:$0xff]
    %vm108 = vcmask 130048
    %v110 = vsel %vm108, %v104, 0
    %v113 = vsel %vm108, %v105, 0
    %v116 = vsel %vm108, %v106, 0
    %v119 = vsel %vm108, %v107, 0
    %121 = vmatprep.subr.mxu0 %v102
    %122 = vmatpush1.msra.mxu0 %v100
    %123 = vmatprep.subr.mxu0 %v103
    %124 = vmatpush1.msra.mxu0 %v101
    %125 = vmatprep.subr.mxu0 0.0
    %126 = vmatpush1.msra.mxu0 0.0
    %127 = vmatprep.subr.mxu0 0.0
    %128 = vmatpush1.msra.mxu0 0.0
    %129 = vmatprep.subr.mxu0 0.0
    %130 = vmatpush1.msra.mxu0 0.0
    %131 = vmatprep.subr.mxu0 0.0
    %132 = vmatpush1.msra.mxu0 0.0
    %133 = vmatprep.subr.mxu0 0.0
    %134 = vmatpush1.msra.mxu0 0.0
    %135 = vmatprep.subr.mxu0 0.0
    %136 = vmatpush1.msra.mxu0 0.0
    %137 = vmatprep.subr.mxu0 0.0
    %138 = vmatpush1.msra.mxu0 0.0
    %139 = vmatprep.subr.mxu0 0.0
    %140 = vmatpush1.msra.mxu0 0.0
    %141 = vmatprep.subr.mxu0 0.0
    %142 = vmatpush1.msra.mxu0 0.0
    %143 = vmatprep.subr.mxu0 0.0
    %144 = vmatpush1.msra.mxu0 0.0
    %145 = vmatprep.subr.mxu0 0.0
    %146 = vmatpush1.msra.mxu0 0.0
    %147 = vmatprep.subr.mxu0 0.0
    %148 = vmatpush1.msra.mxu0 0.0
    %149 = vmatprep.subr.mxu0 0.0
    %150 = vmatpush1.msra.mxu0 0.0
    %151 = vmatprep.subr.mxu0 0.0
    %152 = vmatpush1.msra.mxu0 0.0
    %153 = vmatprep.subr.mxu0 0.0
    %154 = vmatpush1.msra.mxu0 0.0
    %155 = vmatprep.subr.mxu0 0.0
    %156 = vmatpush1.msra.mxu0 0.0
    %157 = vmatprep.subr.mxu0 0.0
    %158 = vmatpush1.msra.mxu0 0.0
    %159 = vmatprep.subr.mxu0 0.0
    %160 = vmatpush1.msra.mxu0 0.0
    %161 = vmatprep.subr.mxu0 0.0
    %162 = vmatpush1.msra.mxu0 0.0
    %163 = vmatprep.subr.mxu0 0.0
    %164 = vmatpush1.msra.mxu0 0.0
    %165 = vmatprep.subr.mxu0 0.0
    %166 = vmatpush1.msra.mxu0 0.0
    %167 = vmatprep.subr.mxu0 0.0
    %168 = vmatpush1.msra.mxu0 0.0
    %169 = vmatprep.subr.mxu0 0.0
    %170 = vmatpush1.msra.mxu0 0.0
    %171 = vmatprep.subr.mxu0 0.0
    %172 = vmatpush1.msra.mxu0 0.0
    %173 = vmatprep.subr.mxu0 0.0
    %174 = vmatpush1.msra.mxu0 0.0
    %175 = vmatprep.subr.mxu0 0.0
    %176 = vmatpush1.msra.mxu0 0.0
    %177 = vmatprep.subr.mxu0 0.0
    %178 = vmatpush1.msra.mxu0 0.0
    %179 = vmatprep.subr.mxu0 0.0
    %180 = vmatpush1.msra.mxu0 0.0
    %181 = vmatprep.subr.mxu0 0.0
    %182 = vmatpush1.msra.mxu0 0.0
    %183 = vmatprep.subr.mxu0 0.0
    %184 = vmatpush1.msra.mxu0 0.0
    %185 = vmatprep.mubr.f32.mxu0 0.0
    %186 = vmatmul.mubr.f32.gmra.mrb[0].mxu0 %v110
    %v187 = vpop.f32.mrb[0].mxu0
    %v188 = vadd.f32 0.0, %v187
    %v189 = vpop.f32.mrb[0].mxu0
    %v190 = vadd.f32 0.0, %v189
    %191 = vmatprep.mubr.f32.mxu0 0.0
    %192 = vmatmul.mubr.f32.gmra.mrb[0].mxu0 %v113
    %v193 = vpop.f32.mrb[0].mxu0
    %v194 = vadd.f32 0.0, %v193
    %v195 = vpop.f32.mrb[0].mxu0
    %v196 = vadd.f32 0.0, %v195
    %197 = vmatprep.mubr.f32.mxu0 0.0
    %198 = vmatmul.mubr.f32.gmra.mrb[0].mxu0 %v116
    %v199 = vpop.f32.mrb[0].mxu0
    %v200 = vadd.f32 0.0, %v199
    %v201 = vpop.f32.mrb[0].mxu0
    %v202 = vadd.f32 0.0, %v201
    %203 = vmatprep.mubr.f32.mxu0 0.0
    %204 = vmatmul.mubr.f32.gmra.mrb[0].mxu0 %v119
    %v205 = vpop.f32.mrb[0].mxu0
    %v206 = vadd.f32 0.0, %v205
    %v207 = vpop.f32.mrb[0].mxu0
    %v208 = vadd.f32 0.0, %v207
    %209 = vdwg.mxu0
    %v210 = vmul.f32 %v188, 0.5
    %v211 = vmul.f32 %v190, 0.5
    %v212 = vmul.f32 %v194, 0.5
    %v213 = vmul.f32 %v196, 0.5
    %v214 = vmul.f32 %v200, 0.5
    %v215 = vmul.f32 %v202, 0.5
    %v216 = vmul.f32 %v206, 0.5
    %v217 = vmul.f32 %v208, 0.5
    %v218 = vmul.f32 %v188, 0.70710677
    %v219 = vmul.f32 %v190, 0.70710677
    %v220 = vmul.f32 %v194, 0.70710677
    %v221 = vmul.f32 %v196, 0.70710677
    %v222 = vmul.f32 %v200, 0.70710677
    %v223 = vmul.f32 %v202, 0.70710677
    %v224 = vmul.f32 %v206, 0.70710677
    %v225 = vmul.f32 %v208, 0.70710677
    %v226 = verf.f32.pop %v218
    %v227 = verf.f32.pop %v219
    %v228 = verf.f32.pop %v220
    %v229 = verf.f32.pop %v221
    %v230 = verf.f32.pop %v222
    %v231 = verf.f32.pop %v223
    %v232 = verf.f32.pop %v224
    %v233 = verf.f32.pop %v225
    %v234 = vadd.f32 %v226, 1.0
    %v235 = vadd.f32 %v227, 1.0
    %v236 = vadd.f32 %v228, 1.0
    %v237 = vadd.f32 %v229, 1.0
    %v238 = vadd.f32 %v230, 1.0
    %v239 = vadd.f32 %v231, 1.0
    %v240 = vadd.f32 %v232, 1.0
    %v241 = vadd.f32 %v233, 1.0
    %v242 = vmul.f32 %v210, %v234
    %v243 = vmul.f32 %v211, %v235
    %v244 = vmul.f32 %v212, %v236
    %v245 = vmul.f32 %v213, %v237
    %v246 = vmul.f32 %v214, %v238
    %v247 = vmul.f32 %v215, %v239
    %v248 = vmul.f32 %v216, %v240
    %v249 = vmul.f32 %v217, %v241
    %v250 = vld [vmem:[%s2] sm:$0xff]
    %v251 = vld [vmem:[%s2 + $0x8] sm:$0xff]
    %vm252 = vcmask 261120
    %v254 = vsel %vm252, %v250, 0
    %v257 = vsel %vm252, %v251, 0
    %259 = vmatprep.subr.mxu0 %v243
    %260 = vmatpush1.msra.mxu0 %v242
    %261 = vmatprep.subr.mxu0 %v245
    %262 = vmatpush1.msra.mxu0 %v244
    %263 = vmatprep.subr.mxu0 %v247
    %264 = vmatpush1.msra.mxu0 %v246
    %265 = vmatprep.subr.mxu0 %v249
    %266 = vmatpush1.msra.mxu0 %v248
    %267 = vmatprep.subr.mxu0 0.0
    %268 = vmatpush1.msra.mxu0 0.0
    %269 = vmatprep.subr.mxu0 0.0
    %270 = vmatpush1.msra.mxu0 0.0
    %271 = vmatprep.subr.mxu0 0.0
    %272 = vmatpush1.msra.mxu0 0.0
    %273 = vmatprep.subr.mxu0 0.0
    %274 = vmatpush1.msra.mxu0 0.0
    %275 = vmatprep.subr.mxu0 0.0
    %276 = vmatpush1.msra.mxu0 0.0
    %277 = vmatprep.subr.mxu0 0.0
    %278 = vmatpush1.msra.mxu0 0.0
    %279 = vmatprep.subr.mxu0 0.0
    %280 = vmatpush1.msra.mxu0 0.0
    %281 = vmatprep.subr.mxu0 0.0
    %282 = vmatpush1.msra.mxu0 0.0
    %283 = vmatprep.subr.mxu0 0.0
    %284 = vmatpush1.msra.mxu0 0.0
    %285 = vmatprep.subr.mxu0 0.0
    %286 = vmatpush1.msra.mxu0 0.0
    %287 = vmatprep.subr.mxu0 0.0
    %288 = vmatpush1.msra.mxu0 0.0
    %289 = vmatprep.subr.mxu0 0.0
    %290 = vmatpush1.msra.mxu0 0.0
    %291 = vmatprep.subr.mxu0 0.0
    %292 = vmatpush1.msra.mxu0 0.0
    %293 = vmatprep.subr.mxu0 0.0
    %294 = vmatpush1.msra.mxu0 0.0
    %295 = vmatprep.subr.mxu0 0.0
    %296 = vmatpush1.msra.mxu0 0.0
    %297 = vmatprep.subr.mxu0 0.0
    %298 = vmatpush1.msra.mxu0 0.0
    %299 = vmatprep.subr.mxu0 0.0
    %300 = vmatpush1.msra.mxu0 0.0
    %301 = vmatprep.subr.mxu0 0.0
    %302 = vmatpush1.msra.mxu0 0.0
    %303 = vmatprep.subr.mxu0 0.0
    %304 = vmatpush1.msra.mxu0 0.0
    %305 = vmatprep.subr.mxu0 0.0
    %306 = vmatpush1.msra.mxu0 0.0
    %307 = vmatprep.subr.mxu0 0.0
    %308 = vmatpush1.msra.mxu0 0.0
    %309 = vmatprep.subr.mxu0 0.0
    %310 = vmatpush1.msra.mxu0 0.0
    %311 = vmatprep.subr.mxu0 0.0
    %312 = vmatpush1.msra.mxu0 0.0
    %313 = vmatprep.subr.mxu0 0.0
    %314 = vmatpush1.msra.mxu0 0.0
    %315 = vmatprep.subr.mxu0 0.0
    %316 = vmatpush1.msra.mxu0 0.0
    %317 = vmatprep.subr.mxu0 0.0
    %318 = vmatpush1.msra.mxu0 0.0
    %319 = vmatprep.subr.mxu0 0.0
    %320 = vmatpush1.msra.mxu0 0.0
    %321 = vmatprep.subr.mxu0 0.0
    %322 = vmatpush1.msra.mxu0 0.0
    %323 = vmatprep.mubr.f32.mxu0 0.0
    %324 = vmatmul.mubr.f32.gmra.mrb[0].mxu0 %v254
    %v325 = vpop.f32.mrb[0].mxu0
    %v326 = vadd.f32 0.0, %v325
    %v327 = vpop.f32.mrb[0].mxu0
    %v328 = vadd.f32 0.0, %v327
    %329 = vmatprep.mubr.f32.mxu0 0.0
    %330 = vmatmul.mubr.f32.gmra.mrb[0].mxu0 %v257
    %v331 = vpop.f32.mrb[0].mxu0
    %v332 = vadd.f32 0.0, %v331
    %v333 = vpop.f32.mrb[0].mxu0
    %v334 = vadd.f32 0.0, %v333
    %335 = vdwg.mxu0
    %v336 = vadd.f32 %v33, %v326
    %v337 = vadd.f32 %v34, %v332
    %v338 = vadd.f32 %v35, %v328
    %v339 = vadd.f32 %v36, %v334
    %v340 = vld [vmem:[%s7] sm:$0x1]
    %v341 = vld [vmem:[%s8] sm:$0x1]
    %342 = vadd.xlane.f32.xlu0 %v336
    %v343 = vpop.xlane.xlu0 %342
    %344 = vadd.xlane.f32.xlu0 %v337
    %v345 = vpop.xlane.xlu0 %344
    %346 = vadd.xlane.f32.xlu0 %v338
    %v347 = vpop.xlane.xlu0 %346
    %348 = vadd.xlane.f32.xlu0 %v339
    %v349 = vpop.xlane.xlu0 %348
    %v350 = vmul.f32 %v343, %v47
    %v351 = vmul.f32 %v345, %v47
    %v352 = vmul.f32 %v347, %v47
    %v353 = vmul.f32 %v349, %v47
    %v354 = vsub.f32 %v336, %v350
    %v355 = vsub.f32 %v337, %v351
    %v356 = vsub.f32 %v338, %v352
    %v357 = vsub.f32 %v339, %v353
    %v358 = vmul.f32 %v354, %v354
    %v359 = vmul.f32 %v355, %v355
    %v360 = vmul.f32 %v356, %v356
    %v361 = vmul.f32 %v357, %v357
    %362 = vadd.xlane.f32.xlu0 %v358
    %v363 = vpop.xlane.xlu0 %362
    %364 = vadd.xlane.f32.xlu0 %v359
    %v365 = vpop.xlane.xlu0 %364
    %366 = vadd.xlane.f32.xlu0 %v360
    %v367 = vpop.xlane.xlu0 %366
    %368 = vadd.xlane.f32.xlu0 %v361
    %v369 = vpop.xlane.xlu0 %368
    %v370 = vmul.f32 %v363, %v47
    %v371 = vmul.f32 %v365, %v47
    %v372 = vmul.f32 %v367, %v47
    %v373 = vmul.f32 %v369, %v47
    %v374 = vadd.f32 %v370, 1e-05
    %v375 = vadd.f32 %v371, 1e-05
    %v376 = vadd.f32 %v372, 1e-05
    %v377 = vadd.f32 %v373, 1e-05
    %v378 = vrsqrt.pop %v374
    %v379 = vrsqrt.pop %v375
    %v380 = vrsqrt.pop %v376
    %v381 = vrsqrt.pop %v377
    %v382 = vmul.f32 %v354, %v378
    %v383 = vmul.f32 %v355, %v379
    %v384 = vmul.f32 %v356, %v380
    %v385 = vmul.f32 %v357, %v381
    %v387 = vlaneseq
    %v388 = vshrl.u32 %v387, 7
    %v389 = vsub.s32 0, %v388
    %v390 = vrot.slane %v340, %v389
    %v392 = vmul.f32 %v382, %v390
    %v393 = vmul.f32 %v383, %v390
    %v394 = vmul.f32 %v384, %v390
    %v395 = vmul.f32 %v385, %v390
    %v397 = vlaneseq
    %v398 = vshrl.u32 %v397, 7
    %v399 = vsub.s32 0, %v398
    %v400 = vrot.slane %v341, %v399
    %v402 = vadd.f32 %v392, %v400
    %v403 = vadd.f32 %v393, %v400
    %v404 = vadd.f32 %v394, %v400
    %v405 = vadd.f32 %v395, %v400
    %v406 = vld [vmem:[%s3] sm:$0xff]
    %v407 = vld [vmem:[%s3 + $0x8] sm:$0xff]
    %v408 = vld [vmem:[%s3 + $0x10] sm:$0xff]
    %v409 = vld [vmem:[%s3 + $0x18] sm:$0xff]
    %v410 = vld [vmem:[%s3 + $0x20] sm:$0xff]
    %v411 = vld [vmem:[%s3 + $0x28] sm:$0xff]
    %v412 = vld [vmem:[%s3 + $0x30] sm:$0xff]
    %v413 = vld [vmem:[%s3 + $0x38] sm:$0xff]
    %v414 = vld [vmem:[%s3 + $0x40] sm:$0xff]
    %v415 = vld [vmem:[%s3 + $0x48] sm:$0xff]
    %v416 = vld [vmem:[%s3 + $0x50] sm:$0xff]
    %v417 = vld [vmem:[%s3 + $0x58] sm:$0xff]
    %v418 = vld [vmem:[%s3 + $0x60] sm:$0xff]
    %v419 = vld [vmem:[%s3 + $0x68] sm:$0xff]
    %v420 = vld [vmem:[%s3 + $0x70] sm:$0xff]
    %v421 = vld [vmem:[%s3 + $0x78] sm:$0xff]
    %v422 = vld [vmem:[%s3 + $0x80] sm:$0xff]
    %v423 = vld [vmem:[%s3 + $0x88] sm:$0xff]
    %v424 = vld [vmem:[%s3 + $0x90] sm:$0xff]
    %v425 = vld [vmem:[%s3 + $0x98] sm:$0xff]
    %v426 = vld [vmem:[%s3 + $0xa0] sm:$0xff]
    %v427 = vld [vmem:[%s3 + $0xa8] sm:$0xff]
    %v428 = vld [vmem:[%s3 + $0xb0] sm:$0xff]
    %v429 = vld [vmem:[%s3 + $0xb8] sm:$0xff]
    %v430 = vld [vmem:[%s3 + $0xc0] sm:$0xff]
    %v431 = vld [vmem:[%s3 + $0xc8] sm:$0xff]
    %v432 = vld [vmem:[%s3 + $0xd0] sm:$0xff]
    %v433 = vld [vmem:[%s3 + $0xd8] sm:$0xff]
    %v434 = vld [vmem:[%s3 + $0xe0] sm:$0xff]
    %v435 = vld [vmem:[%s3 + $0xe8] sm:$0xff]
    %v436 = vld [vmem:[%s3 + $0xf0] sm:$0xff]
    %v437 = vld [vmem:[%s3 + $0xf8] sm:$0xff]
    %438 = vmatprep.subr.mxu0 %v407
    %439 = vmatpush1.msra.mxu0 %v406
    %440 = vmatprep.subr.mxu0 %v409
    %441 = vmatpush1.msra.mxu0 %v408
    %442 = vmatprep.subr.mxu0 %v411
    %443 = vmatpush1.msra.mxu0 %v410
    %444 = vmatprep.subr.mxu0 %v413
    %445 = vmatpush1.msra.mxu0 %v412
    %446 = vmatprep.subr.mxu0 %v415
    %447 = vmatpush1.msra.mxu0 %v414
    %448 = vmatprep.subr.mxu0 %v417
    %449 = vmatpush1.msra.mxu0 %v416
    %450 = vmatprep.subr.mxu0 %v419
    %451 = vmatpush1.msra.mxu0 %v418
    %452 = vmatprep.subr.mxu0 %v421
    %453 = vmatpush1.msra.mxu0 %v420
    %454 = vmatprep.subr.mxu0 %v423
    %455 = vmatpush1.msra.mxu0 %v422
    %456 = vmatprep.subr.mxu0 %v425
    %457 = vmatpush1.msra.mxu0 %v424
    %458 = vmatprep.subr.mxu0 %v427
    %459 = vmatpush1.msra.mxu0 %v426
    %460 = vmatprep.subr.mxu0 %v429
    %461 = vmatpush1.msra.mxu0 %v428
    %462 = vmatprep.subr.mxu0 %v431
    %463 = vmatpush1.msra.mxu0 %v430
    %464 = vmatprep.subr.mxu0 %v433
    %465 = vmatpush1.msra.mxu0 %v432
    %466 = vmatprep.subr.mxu0 %v435
    %467 = vmatpush1.msra.mxu0 %v434
    %468 = vmatprep.subr.mxu0 %v437
    %469 = vmatpush1.msra.mxu0 %v436
    %470 = vmatprep.subr.mxu0 0.0
    %471 = vmatpush1.msra.mxu0 0.0
    %472 = vmatprep.subr.mxu0 0.0
    %473 = vmatpush1.msra.mxu0 0.0
    %474 = vmatprep.subr.mxu0 0.0
    %475 = vmatpush1.msra.mxu0 0.0
    %476 = vmatprep.subr.mxu0 0.0
    %477 = vmatpush1.msra.mxu0 0.0
    %478 = vmatprep.subr.mxu0 0.0
    %479 = vmatpush1.msra.mxu0 0.0
    %480 = vmatprep.subr.mxu0 0.0
    %481 = vmatpush1.msra.mxu0 0.0
    %482 = vmatprep.subr.mxu0 0.0
    %483 = vmatpush1.msra.mxu0 0.0
    %484 = vmatprep.subr.mxu0 0.0
    %485 = vmatpush1.msra.mxu0 0.0
    %486 = vmatprep.subr.mxu0 0.0
    %487 = vmatpush1.msra.mxu0 0.0
    %488 = vmatprep.subr.mxu0 0.0
    %489 = vmatpush1.msra.mxu0 0.0
    %490 = vmatprep.subr.mxu0 0.0
    %491 = vmatpush1.msra.mxu0 0.0
    %492 = vmatprep.subr.mxu0 0.0
    %493 = vmatpush1.msra.mxu0 0.0
    %494 = vmatprep.subr.mxu0 0.0
    %495 = vmatpush1.msra.mxu0 0.0
    %496 = vmatprep.subr.mxu0 0.0
    %497 = vmatpush1.msra.mxu0 0.0
    %498 = vmatprep.subr.mxu0 0.0
    %499 = vmatpush1.msra.mxu0 0.0
    %500 = vmatprep.subr.mxu0 0.0
    %501 = vmatpush1.msra.mxu0 0.0
    %502 = vmatprep.mubr.f32.mxu0 0.0
    %503 = vmatmul.mubr.f32.gmra.mrb[0].mxu0 %v402
    %v504 = vpop.f32.mrb[0].mxu0
    %v505 = vadd.f32 0.0, %v504
    %v506 = vpop.f32.mrb[0].mxu0
    %v507 = vadd.f32 0.0, %v506
    %508 = vmatprep.mubr.f32.mxu0 0.0
    %509 = vmatmul.mubr.f32.gmra.mrb[0].mxu0 %v403
    %v510 = vpop.f32.mrb[0].mxu0
    %v511 = vadd.f32 0.0, %v510
    %v512 = vpop.f32.mrb[0].mxu0
    %v513 = vadd.f32 0.0, %v512
    %514 = vmatprep.mubr.f32.mxu0 0.0
    %515 = vmatmul.mubr.f32.gmra.mrb[0].mxu0 %v404
    %v516 = vpop.f32.mrb[0].mxu0
    %v517 = vadd.f32 0.0, %v516
    %v518 = vpop.f32.mrb[0].mxu0
    %v519 = vadd.f32 0.0, %v518
    %520 = vmatprep.mubr.f32.mxu0 0.0
    %521 = vmatmul.mubr.f32.gmra.mrb[0].mxu0 %v405
    %v522 = vpop.f32.mrb[0].mxu0
    %v523 = vadd.f32 0.0, %v522
    %v524 = vpop.f32.mrb[0].mxu0
    %v525 = vadd.f32 0.0, %v524
    %526 = vdwg.mxu0
    %v527 = vmul.f32 %v505, 0.5
    %v528 = vmul.f32 %v507, 0.5
    %v529 = vmul.f32 %v511, 0.5
    %v530 = vmul.f32 %v513, 0.5
    %v531 = vmul.f32 %v517, 0.5
    %v532 = vmul.f32 %v519, 0.5
    %v533 = vmul.f32 %v523, 0.5
    %v534 = vmul.f32 %v525, 0.5
    %v535 = vmul.f32 %v505, 0.70710677
    %v536 = vmul.f32 %v507, 0.70710677
    %v537 = vmul.f32 %v511, 0.70710677
    %v538 = vmul.f32 %v513, 0.70710677
    %v539 = vmul.f32 %v517, 0.70710677
    %v540 = vmul.f32 %v519, 0.70710677
    %v541 = vmul.f32 %v523, 0.70710677
    %v542 = vmul.f32 %v525, 0.70710677
    %v543 = verf.f32.pop %v535
    %v544 = verf.f32.pop %v536
    %v545 = verf.f32.pop %v537
    %v546 = verf.f32.pop %v538
    %v547 = verf.f32.pop %v539
    %v548 = verf.f32.pop %v540
    %v549 = verf.f32.pop %v541
    %v550 = verf.f32.pop %v542
    %v551 = vadd.f32 %v543, 1.0
    %v552 = vadd.f32 %v544, 1.0
    %v553 = vadd.f32 %v545, 1.0
    %v554 = vadd.f32 %v546, 1.0
    %v555 = vadd.f32 %v547, 1.0
    %v556 = vadd.f32 %v548, 1.0
    %v557 = vadd.f32 %v549, 1.0
    %v558 = vadd.f32 %v550, 1.0
    %v559 = vmul.f32 %v527, %v551
    %v560 = vmul.f32 %v528, %v552
    %v561 = vmul.f32 %v529, %v553
    %v562 = vmul.f32 %v530, %v554
    %v563 = vmul.f32 %v531, %v555
    %v564 = vmul.f32 %v532, %v556
    %v565 = vmul.f32 %v533, %v557
    %v566 = vmul.f32 %v534, %v558
    %v567 = vld [vmem:[%s4] sm:$0xff]
    %v568 = vld [vmem:[%s4 + $0x8] sm:$0xff]
    %v569 = vld [vmem:[%s4 + $0x10] sm:$0xff]
    %v570 = vld [vmem:[%s4 + $0x18] sm:$0xff]
    %v571 = vld [vmem:[%s4 + $0x20] sm:$0xff]
    %v572 = vld [vmem:[%s4 + $0x28] sm:$0xff]
    %v573 = vld [vmem:[%s4 + $0x30] sm:$0xff]
    %v574 = vld [vmem:[%s4 + $0x38] sm:$0xff]
    %v575 = vld [vmem:[%s4 + $0x40] sm:$0xff]
    %v576 = vld [vmem:[%s4 + $0x48] sm:$0xff]
    %v577 = vld [vmem:[%s4 + $0x50] sm:$0xff]
    %v578 = vld [vmem:[%s4 + $0x58] sm:$0xff]
    %v579 = vld [vmem:[%s4 + $0x60] sm:$0xff]
    %v580 = vld [vmem:[%s4 + $0x68] sm:$0xff]
    %v581 = vld [vmem:[%s4 + $0x70] sm:$0xff]
    %v582 = vld [vmem:[%s4 + $0x78] sm:$0xff]
    %v583 = vld [vmem:[%s4 + $0x80] sm:$0xff]
    %v584 = vld [vmem:[%s4 + $0x88] sm:$0xff]
    %v585 = vld [vmem:[%s4 + $0x90] sm:$0xff]
    %v586 = vld [vmem:[%s4 + $0x98] sm:$0xff]
    %v587 = vld [vmem:[%s4 + $0xa0] sm:$0xff]
    %v588 = vld [vmem:[%s4 + $0xa8] sm:$0xff]
    %v589 = vld [vmem:[%s4 + $0xb0] sm:$0xff]
    %v590 = vld [vmem:[%s4 + $0xb8] sm:$0xff]
    %v591 = vld [vmem:[%s4 + $0xc0] sm:$0xff]
    %v592 = vld [vmem:[%s4 + $0xc8] sm:$0xff]
    %v593 = vld [vmem:[%s4 + $0xd0] sm:$0xff]
    %v594 = vld [vmem:[%s4 + $0xd8] sm:$0xff]
    %v595 = vld [vmem:[%s4 + $0xe0] sm:$0xff]
    %v596 = vld [vmem:[%s4 + $0xe8] sm:$0xff]
    %v597 = vld [vmem:[%s4 + $0xf0] sm:$0xff]
    %v598 = vld [vmem:[%s4 + $0xf8] sm:$0xff]
    %599 = vmatprep.subr.mxu0 0.0
    %600 = vmatpush1.msra.mxu0 %v567
    %601 = vmatprep.subr.mxu0 0.0
    %602 = vmatpush1.msra.mxu0 %v568
    %603 = vmatprep.subr.mxu0 0.0
    %604 = vmatpush1.msra.mxu0 %v569
    %605 = vmatprep.subr.mxu0 0.0
    %606 = vmatpush1.msra.mxu0 %v570
    %607 = vmatprep.subr.mxu0 0.0
    %608 = vmatpush1.msra.mxu0 %v571
    %609 = vmatprep.subr.mxu0 0.0
    %610 = vmatpush1.msra.mxu0 %v572
    %611 = vmatprep.subr.mxu0 0.0
    %612 = vmatpush1.msra.mxu0 %v573
    %613 = vmatprep.subr.mxu0 0.0
    %614 = vmatpush1.msra.mxu0 %v574
    %615 = vmatprep.subr.mxu0 0.0
    %616 = vmatpush1.msra.mxu0 %v575
    %617 = vmatprep.subr.mxu0 0.0
    %618 = vmatpush1.msra.mxu0 %v576
    %619 = vmatprep.subr.mxu0 0.0
    %620 = vmatpush1.msra.mxu0 %v577
    %621 = vmatprep.subr.mxu0 0.0
    %622 = vmatpush1.msra.mxu0 %v578
    %623 = vmatprep.subr.mxu0 0.0
    %624 = vmatpush1.msra.mxu0 %v579
    %625 = vmatprep.subr.mxu0 0.0
    %626 = vmatpush1.msra.mxu0 %v580
    %627 = vmatprep.subr.mxu0 0.0
    %628 = vmatpush1.msra.mxu0 %v581
    %629 = vmatprep.subr.mxu0 0.0
    %630 = vmatpush1.msra.mxu0 %v582
    %631 = vmatprep.subr.mxu0 0.0
    %632 = vmatpush1.msra.mxu0 %v583
    %633 = vmatprep.subr.mxu0 0.0
    %634 = vmatpush1.msra.mxu0 %v584
    %635 = vmatprep.subr.mxu0 0.0
    %636 = vmatpush1.msra.mxu0 %v585
    %637 = vmatprep.subr.mxu0 0.0
    %638 = vmatpush1.msra.mxu0 %v586
    %639 = vmatprep.subr.mxu0 0.0
    %640 = vmatpush1.msra.mxu0 %v587
    %641 = vmatprep.subr.mxu0 0.0
    %642 = vmatpush1.msra.mxu0 %v588
    %643 = vmatprep.subr.mxu0 0.0
    %644 = vmatpush1.msra.mxu0 %v589
    %645 = vmatprep.subr.mxu0 0.0
    %646 = vmatpush1.msra.mxu0 %v590
    %647 = vmatprep.subr.mxu0 0.0
    %648 = vmatpush1.msra.mxu0 %v591
    %649 = vmatprep.subr.mxu0 0.0
    %650 = vmatpush1.msra.mxu0 %v592
    %651 = vmatprep.subr.mxu0 0.0
    %652 = vmatpush1.msra.mxu0 %v593
    %653 = vmatprep.subr.mxu0 0.0
    %654 = vmatpush1.msra.mxu0 %v594
    %655 = vmatprep.subr.mxu0 0.0
    %656 = vmatpush1.msra.mxu0 %v595
    %657 = vmatprep.subr.mxu0 0.0
    %658 = vmatpush1.msra.mxu0 %v596
    %659 = vmatprep.subr.mxu0 0.0
    %660 = vmatpush1.msra.mxu0 %v597
    %661 = vmatprep.subr.mxu0 0.0
    %662 = vmatpush1.msra.mxu0 %v598
    %663 = vmatprep.mubr.f32.mxu0 %v560
    %664 = vmatmul.mubr.f32.gmra.mrb[0].mxu0 %v559
    %v665 = vpop.f32.mrb[0].mxu0
    %v666 = vadd.f32 0.0, %v665
    %v667 = vpop.f32.mrb[0].mxu0
    %668 = vmatprep.mubr.f32.mxu0 %v562
    %669 = vmatmul.mubr.f32.gmra.mrb[0].mxu0 %v561
    %v670 = vpop.f32.mrb[0].mxu0
    %v671 = vadd.f32 0.0, %v670
    %v672 = vpop.f32.mrb[0].mxu0
    %673 = vmatprep.mubr.f32.mxu0 %v564
    %674 = vmatmul.mubr.f32.gmra.mrb[0].mxu0 %v563
    %v675 = vpop.f32.mrb[0].mxu0
    %v676 = vadd.f32 0.0, %v675
    %v677 = vpop.f32.mrb[0].mxu0
    %678 = vmatprep.mubr.f32.mxu0 %v566
    %679 = vmatmul.mubr.f32.gmra.mrb[0].mxu0 %v565
    %v680 = vpop.f32.mrb[0].mxu0
    %v681 = vadd.f32 0.0, %v680
    %v682 = vpop.f32.mrb[0].mxu0
    %683 = vdwg.mxu0
    %v684 = vadd.f32 %v336, %v666
    %v685 = vadd.f32 %v337, %v671
    %v686 = vadd.f32 %v338, %v676
    %v687 = vadd.f32 %v339, %v681
    %688 = vst [vmem:[#allocation2] sm:$0xff] %v684
    %689 = vst [vmem:[#allocation2 + $0x8] sm:$0xff] %v685
    %690 = vst [vmem:[#allocation2 + $0x10] sm:$0xff] %v686
    %691 = vst [vmem:[#allocation2 + $0x18] sm:$0xff] %v687
    // Predicated region
    $region38: #{mixer_block.1} parent=1 // pred_check
      _
    $region39: #{mixer_block.1} parent=1 // pred_check_branch
      %693 = sbr.rel (0) target = $region41
    $region40: #{mixer_block.1} parent=1 // pred_region
      %s695 = ssub.s32 512, 512
      %696 = vsyncadd [#allocation3], %s695
      %s697 = sshll.u32 [#allocation2], 4
      %s698 = int_to_ptr.vmem [resolvable:$true] %s697
      %703 = dma.vmem_to_hbm [thread:$0]  %s698, 512, %s9, [#allocation3], 128, 128, 8
    $region41: #{mixer_block.1} parent=1 // pred_fallthru
      _
    // Predicated region
    $region42: #{mixer_block.1} parent=1 // pred_check
      _
    $region43: #{mixer_block.1} parent=1 // pred_check_branch
      %705 = sbr.rel (0) target = $region45
    $region44: #{mixer_block.1} parent=1 // pred_region
      %706 = dma.done [#allocation3], 512
    $region45: #{mixer_block.1} parent=1 // pred_fallthru
      _
    %707 = vsyncpa [#allocation3], 1

</llo_original>
